<compile_context>
chip_gen: v5e
topology: v5e:2x2
jax: 0.10.0
libtpu: 0.0.40
codegen_flags: <defaults>
</compile_context>

<pallas_src>
import functools
import math

import jax
import jax.numpy as jnp
from jax.experimental import pallas as pl
from jax.experimental.pallas import tpu as pltpu


def _round_up(n, m):
    return ((n + m - 1) // m) * m


def ffnn_kernel(seed_ref, x_ref, w1_ref, b1_ref, w2_ref, b2_ref, o_ref,
                *, apply_dropout: bool):
    # fc1 + ReLU
    x = x_ref[...]
    h = jnp.dot(x, w1_ref[...], preferred_element_type=jnp.float32) + b1_ref[...]
    h = jnp.maximum(h, 0.0)

    if apply_dropout:
        # Dropout p=0.5 (training mode, as in F.dropout default).
        # Counter-based hash PRNG: unique counter per element of the *padded*
        # batch (tile offset via pl.program_id), mixed with the host seed, then
        # murmur-style finalizer. Keep prob = 0.5, kept units scaled by 1/(1-p)=2.
        tb, hp = h.shape
        row = jax.lax.broadcasted_iota(jnp.int32, (tb, hp), 0).astype(jnp.uint32)
        col = jax.lax.broadcasted_iota(jnp.int32, (tb, hp), 1).astype(jnp.uint32)
        base = pl.program_id(0).astype(jnp.uint32) * jnp.uint32(tb)
        gidx = (base + row) * jnp.uint32(hp) + col
        bits = gidx + seed_ref[0].astype(jnp.uint32) * jnp.uint32(0x9E3779B9)
        bits = bits * jnp.uint32(0x85EBCA6B)
        bits = bits ^ (bits >> jnp.uint32(13))
        bits = bits * jnp.uint32(0xC2B2AE35)
        bits = bits ^ (bits >> jnp.uint32(16))
        scale = jnp.where(bits < jnp.uint32(0x80000000),
                          jnp.float32(2.0), jnp.float32(0.0))
        h = h * scale

    # fc2
    y = jnp.dot(h, w2_ref[...], preferred_element_type=jnp.float32) + b2_ref[...]
    o_ref[...] = y


def ffnn_forward(x, w1, b1, w2, b2, seed=0, dropout=True, tile_b=128):
    B, INP = x.shape
    HID = w1.shape[1]
    OUT = w2.shape[1]

    # Lane-dense / sublane-aligned padding (exact: padded weight rows/cols are 0).
    INP_P = _round_up(INP, 128)
    HID_P = _round_up(HID, 128)
    OUT_P = _round_up(OUT, 128)
    B_P = _round_up(B, 8)
    TILE_B = min(B_P, tile_b)
    B_P = _round_up(B_P, TILE_B)

    xp = jnp.zeros((B_P, INP_P), jnp.float32).at[:B, :INP].set(x)
    w1p = jnp.zeros((INP_P, HID_P), jnp.float32).at[:INP, :HID].set(w1)
    b1p = jnp.zeros((1, HID_P), jnp.float32).at[:, :HID].set(b1)
    w2p = jnp.zeros((HID_P, OUT_P), jnp.float32).at[:HID, :OUT].set(w2)
    b2p = jnp.zeros((1, OUT_P), jnp.float32).at[:, :OUT].set(b2)

    seed_arr = jnp.asarray([seed], dtype=jnp.int32)
    kernel = functools.partial(ffnn_kernel, apply_dropout=bool(dropout))

    y = pl.pallas_call(
        kernel,
        out_shape=jax.ShapeDtypeStruct((B_P, OUT_P), jnp.float32),
        grid=(B_P // TILE_B,),
        in_specs=[
            pl.BlockSpec(memory_space=pltpu.MemorySpace.SMEM),        # seed
            pl.BlockSpec((TILE_B, INP_P), lambda i: (i, 0)),          # x tile
            pl.BlockSpec((INP_P, HID_P), lambda i: (0, 0)),           # w1 (resident)
            pl.BlockSpec((1, HID_P), lambda i: (0, 0)),               # b1 (resident)
            pl.BlockSpec((HID_P, OUT_P), lambda i: (0, 0)),           # w2 (resident)
            pl.BlockSpec((1, OUT_P), lambda i: (0, 0)),               # b2 (resident)
        ],
        out_specs=pl.BlockSpec((TILE_B, OUT_P), lambda i: (i, 0)),
        compiler_params=pltpu.CompilerParams(
            dimension_semantics=("parallel",)),
    )(seed_arr, xp, w1p, b1p, w2p, b2p)

    # Un-pad, then .squeeze() from the PyTorch module (drops size-1 dims).
    return jnp.squeeze(y[:B, :OUT])


def init_params(key, inp, hid, out):
    """Deterministic init mirroring the module: xavier_uniform weights,
    default nn.Linear uniform(-1/sqrt(fan_in), 1/sqrt(fan_in)) biases."""
    k1, k2, k3, k4 = jax.random.split(key, 4)

    bnd1 = math.sqrt(6.0 / (inp + hid))
    bnd2 = math.sqrt(6.0 / (hid + out))
    # stored as (in_features, out_features) so kernel does x @ w
    w1 = jax.random.uniform(k1, (inp, hid), jnp.float32, -bnd1, bnd1)
    w2 = jax.random.uniform(k2, (hid, out), jnp.float32, -bnd2, bnd2)

    bb1 = 1.0 / math.sqrt(inp)
    bb2 = 1.0 / math.sqrt(hid)
    b1 = jax.random.uniform(k3, (1, hid), jnp.float32, -bb1, bb1)
    b2 = jax.random.uniform(k4, (1, out), jnp.float32, -bb2, bb2)
    return w1, b1, w2, b2


if __name__ == "__main__":
    B, INP, HID, OUT = 8, 16, 32, 4

    key = jax.random.PRNGKey(0)
    kx, kp = jax.random.split(key)
    x = jax.random.normal(kx, (B, INP), dtype=jnp.float32)
    w1, b1, w2, b2 = init_params(kp, INP, HID, OUT)

    # 1) dropout disabled: exact numeric check vs plain-JAX reference.
    y_eval = ffnn_forward(x, w1, b1, w2, b2, seed=0, dropout=False)
    jax.block_until_ready(y_eval)
    hi = jnp.maximum(
        jnp.dot(x, w1, precision=jax.lax.Precision.HIGHEST) + b1, 0.0)
    ref = jnp.squeeze(
        jnp.dot(hi, w2, precision=jax.lax.Precision.HIGHEST) + b2)
    assert y_eval.shape == ref.shape, (y_eval.shape, ref.shape)
    assert jnp.allclose(y_eval, ref, atol=1e-2, rtol=1e-2), \
        float(jnp.max(jnp.abs(y_eval - ref)))

    # 2) training-mode forward (dropout p=0.5), matching the module's default path.
    y = ffnn_forward(x, w1, b1, w2, b2, seed=1234, dropout=True)
    jax.block_until_ready(y)
    assert y.shape == (B, OUT), y.shape
    assert jnp.all(jnp.isfinite(y))
    print("KERNEL_OK")
</pallas_src>

<mosaic_0001>
module attributes {stable_mosaic.version = 11 : i64} {
  func.func @ffnn_kernel(%arg0: i32, %arg1: memref<1xi32, #tpu.memory_space<smem>>, %arg2: memref<8x128xf32, #tpu.memory_space<vmem>>, %arg3: memref<128x128xf32, #tpu.memory_space<vmem>>, %arg4: memref<1x128xf32, #tpu.memory_space<vmem>>, %arg5: memref<128x128xf32, #tpu.memory_space<vmem>>, %arg6: memref<1x128xf32, #tpu.memory_space<vmem>>, %arg7: memref<8x128xf32, #tpu.memory_space<vmem>>) attributes {dimension_semantics = [#tpu.dimension_semantics<parallel>], iteration_bounds = array<i64: 1>, scalar_prefetch = 0 : i64, scratch_operands = 0 : i64, tpu.core_type = #tpu.core_type<tc>, window_params = [{transform_indices = @transform_0, window_bounds = array<i64: 1>}, {transform_indices = @transform_1, window_bounds = array<i64: 8, 128>}, {pipeline_mode = #tpu.pipeline_mode<synchronous>, transform_indices = @transform_2, window_bounds = array<i64: 128, 128>}, {pipeline_mode = #tpu.pipeline_mode<synchronous>, transform_indices = @transform_3, window_bounds = array<i64: 1, 128>}, {pipeline_mode = #tpu.pipeline_mode<synchronous>, transform_indices = @transform_4, window_bounds = array<i64: 128, 128>}, {pipeline_mode = #tpu.pipeline_mode<synchronous>, transform_indices = @transform_5, window_bounds = array<i64: 1, 128>}, {transform_indices = @transform_6, window_bounds = array<i64: 8, 128>}]} {
    %c0 = arith.constant 0 : index
    %c0_0 = arith.constant 0 : index
    %0 = vector.load %arg2[%c0, %c0_0] : memref<8x128xf32, #tpu.memory_space<vmem>>, vector<8x128xf32>
    %c0_1 = arith.constant 0 : index
    %c0_2 = arith.constant 0 : index
    %1 = vector.load %arg3[%c0_1, %c0_2] : memref<128x128xf32, #tpu.memory_space<vmem>>, vector<128x128xf32>
    %cst = arith.constant dense<0.000000e+00> : vector<8x128xf32>
    %2 = tpu.matmul %0, %1, %cst {dimension_numbers = #tpu.dot_dimension_numbers<[1], [0], [0], [1], [0, 0, 1, 1], [], []>} : vector<8x128xf32>, vector<128x128xf32>, vector<8x128xf32> -> vector<8x128xf32>
    %c0_3 = arith.constant 0 : index
    %c0_4 = arith.constant 0 : index
    %3 = vector.load %arg4[%c0_3, %c0_4] : memref<1x128xf32, #tpu.memory_space<vmem>>, vector<1x128xf32>
    %4 = vector.broadcast %3 : vector<1x128xf32> to vector<8x128xf32>
    %5 = arith.addf %2, %4 : vector<8x128xf32>
    %cst_5 = arith.constant 0.000000e+00 : f32
    %6 = vector.broadcast %cst_5 : f32 to vector<8x128xf32>
    %7 = arith.maximumf %5, %6 : vector<8x128xf32>
    %c0_6 = arith.constant 0 : index
    %c0_7 = arith.constant 0 : index
    %8 = vector.load %arg5[%c0_6, %c0_7] : memref<128x128xf32, #tpu.memory_space<vmem>>, vector<128x128xf32>
    %cst_8 = arith.constant dense<0.000000e+00> : vector<8x128xf32>
    %9 = tpu.matmul %7, %8, %cst_8 {dimension_numbers = #tpu.dot_dimension_numbers<[1], [0], [0], [1], [0, 0, 1, 1], [], []>} : vector<8x128xf32>, vector<128x128xf32>, vector<8x128xf32> -> vector<8x128xf32>
    %c0_9 = arith.constant 0 : index
    %c0_10 = arith.constant 0 : index
    %10 = vector.load %arg6[%c0_9, %c0_10] : memref<1x128xf32, #tpu.memory_space<vmem>>, vector<1x128xf32>
    %11 = vector.broadcast %10 : vector<1x128xf32> to vector<8x128xf32>
    %12 = arith.addf %9, %11 : vector<8x128xf32>
    %c0_11 = arith.constant 0 : index
    %c0_12 = arith.constant 0 : index
    %13 = vector.load %arg7[%c0_11, %c0_12] : memref<8x128xf32, #tpu.memory_space<vmem>>, vector<8x128xf32>
    tpu.vector_store %arg7[%c0_11, %c0_12], %12 {strides = array<i32>} : memref<8x128xf32, #tpu.memory_space<vmem>>, vector<8x128xf32>,
    return
  }
  func.func @transform_0(%arg0: i32) -> i32 {
    %c0_i32 = arith.constant 0 : i32
    %c0_i32_0 = arith.constant 0 : i32
    return %c0_i32 : i32
  }
  func.func @transform_1(%arg0: i32) -> (i32, i32) {
    %c0_i32 = arith.constant 0 : i32
    %c0_i32_0 = arith.constant 0 : i32
    return %arg0, %c0_i32 : i32, i32
  }
  func.func @transform_2(%arg0: i32) -> (i32, i32) {
    %c0_i32 = arith.constant 0 : i32
    %c0_i32_0 = arith.constant 0 : i32
    %c0_i32_1 = arith.constant 0 : i32
    return %c0_i32, %c0_i32_0 : i32, i32
  }
  func.func @transform_3(%arg0: i32) -> (i32, i32) {
    %c0_i32 = arith.constant 0 : i32
    %c0_i32_0 = arith.constant 0 : i32
    %c0_i32_1 = arith.constant 0 : i32
    return %c0_i32, %c0_i32_0 : i32, i32
  }
  func.func @transform_4(%arg0: i32) -> (i32, i32) {
    %c0_i32 = arith.constant 0 : i32
    %c0_i32_0 = arith.constant 0 : i32
    %c0_i32_1 = arith.constant 0 : i32
    return %c0_i32, %c0_i32_0 : i32, i32
  }
  func.func @transform_5(%arg0: i32) -> (i32, i32) {
    %c0_i32 = arith.constant 0 : i32
    %c0_i32_0 = arith.constant 0 : i32
    %c0_i32_1 = arith.constant 0 : i32
    return %c0_i32, %c0_i32_0 : i32, i32
  }
  func.func @transform_6(%arg0: i32) -> (i32, i32) {
    %c0_i32 = arith.constant 0 : i32
    %c0_i32_0 = arith.constant 0 : i32
    return %arg0, %c0_i32 : i32, i32
  }
}

</mosaic_0001>

<llo_original>
// kernel: tpu_custom_call.1
$region0: #{tpu_custom_call.1}
  #allocation0 [shape = 'u32[]', space=smem, size = 0x4, offset = 0x4, fixed_abs, tag = 'smem constant byte address 0x4 - core index']
  #allocation1 [shape = 'u32[72,128]{1,0:T(1,128)}', space=vmem, size = 0x9000, scoped, tag = 'internal scratch']
  #allocation2 [shape = 's32[1]{0:T(128)S(6)}', space=smem, size = 0x200, scoped, tag = 'scoped memory for tpu_custom_call.1']
  %s0 = inlined_call_operand.<no memory space> [shape: s32[1], index: 0, kind: input, shape index: {}]
  %s1 = inlined_call_operand.hbm [shape: f32[8,128], index: 1, kind: input, shape index: {}]
  %s2 = inlined_call_operand.hbm [shape: f32[128,128], index: 2, kind: input, shape index: {}]
  %s3 = inlined_call_operand.vmem [shape: f32[1,128], index: 3, kind: input, shape index: {}]
  %s4 = inlined_call_operand.hbm [shape: f32[128,128], index: 4, kind: input, shape index: {}]
  %s5 = inlined_call_operand.vmem [shape: f32[1,128], index: 5, kind: input, shape index: {}]
  %s6 = inlined_call_operand.hbm [shape: f32[8,128], index: 6, kind: output, shape index: {}]
  %s7 = sld [smem:[#allocation0]]
  $region46: #{tpu_custom_call.1} parent=0
    _
  %s9 = ssub.s32 1, %s7
  %s10 = scalar_select 0, %s9, %s7
  %11 = sst [smem:[#allocation2]] %s0
  $region1: #{tpu_custom_call.1} parent=0
    #allocation3 [shape = 'u8[4096]{0}', space=vmem, size = 0x1000, scoped, tag = 'input window, operand 1, single buffered']
    #allocation4 [shape = 's32[1]{0}', space=sflag, size = 0x4, scoped, tag = 'scoped memory for tpu_custom_call.1']
    #allocation5 [shape = 's32[1]{0}', space=sflag, size = 0x4, scoped, tag = 'scoped memory for tpu_custom_call.1']
    #allocation6 [shape = 'u8[65536]{0}', space=vmem, size = 0x10000, scoped, tag = 'input window, operand 2, single buffered']
    #allocation7 [shape = 's32[1]{0}', space=sflag, size = 0x4, scoped, tag = 'scoped memory for tpu_custom_call.1']
    #allocation8 [shape = 'u8[65536]{0}', space=vmem, size = 0x10000, scoped, tag = 'input window, operand 4, single buffered']
    #allocation9 [shape = 'u8[4096]{0}', space=vmem, size = 0x1000, scoped, tag = 'output window, operand 0, single buffered']
    %12 = vsyncpa [#allocation4], 0
    %13 = vsyncpa [#allocation7], 0
    %14 = vsyncpa [#allocation5], 0
    // Predicated region
    $region2: #{tpu_custom_call.1} parent=1 // pred_check
      _
    $region3: #{tpu_custom_call.1} parent=1 // pred_check_branch
      %16 = sbr.rel (0) target = $region5
    $region4: #{tpu_custom_call.1} parent=1 // pred_region
      _
    $region5: #{tpu_custom_call.1} parent=1 // pred_fallthru
      _
    // Predicated region
    $region6: #{tpu_custom_call.1} parent=1 // pred_check
      _
    $region7: #{tpu_custom_call.1} parent=1 // pred_check_branch
      %18 = sbr.rel (0) target = $region9
    $region8: #{tpu_custom_call.1} parent=1 // pred_region
      %20 = vsyncadd [#allocation4], 0
      %s22 = sshll.u32 %s1, 4
      %s23 = int_to_ptr.hbm [resolvable:$true] %s22
      %s24 = sshll.u32 [#allocation3], 4
      %s25 = int_to_ptr.vmem [resolvable:$true] %s24
      %27 = dma.hbm_to_vmem [thread:$0]  %s23, 128, %s25, [#allocation4]
    $region9: #{tpu_custom_call.1} parent=1 // pred_fallthru
      _
    // Predicated region
    $region10: #{tpu_custom_call.1} parent=1 // pred_check
      _
    $region11: #{tpu_custom_call.1} parent=1 // pred_check_branch
      %29 = sbr.rel (0) target = $region13
    $region12: #{tpu_custom_call.1} parent=1 // pred_region
      %31 = vsyncadd [#allocation7], 0
      %s32 = sshll.u32 %s2, 4
      %s33 = int_to_ptr.hbm [resolvable:$true] %s32
      %s34 = sshll.u32 [#allocation6], 4
      %s35 = int_to_ptr.vmem [resolvable:$true] %s34
      %40 = dma.hbm_to_vmem [thread:$0]  %s33, 2048, %s35, [#allocation7], 128, 128, 8
    $region13: #{tpu_custom_call.1} parent=1 // pred_fallthru
      _
    // Predicated region
    $region14: #{tpu_custom_call.1} parent=1 // pred_check
      _
    $region15: #{tpu_custom_call.1} parent=1 // pred_check_branch
      %42 = sbr.rel (0) target = $region17
    $region16: #{tpu_custom_call.1} parent=1 // pred_region
      _
    $region17: #{tpu_custom_call.1} parent=1 // pred_fallthru
      _
    // Predicated region
    $region18: #{tpu_custom_call.1} parent=1 // pred_check
      _
    $region19: #{tpu_custom_call.1} parent=1 // pred_check_branch
      %44 = sbr.rel (0) target = $region21
    $region20: #{tpu_custom_call.1} parent=1 // pred_region
      %46 = vsyncadd [#allocation7], 0
      %s47 = sshll.u32 %s4, 4
      %s48 = int_to_ptr.hbm [resolvable:$true] %s47
      %s49 = sshll.u32 [#allocation8], 4
      %s50 = int_to_ptr.vmem [resolvable:$true] %s49
      %55 = dma.hbm_to_vmem [thread:$0]  %s48, 2048, %s50, [#allocation7], 128, 128, 8
    $region21: #{tpu_custom_call.1} parent=1 // pred_fallthru
      _
    // Predicated region
    $region22: #{tpu_custom_call.1} parent=1 // pred_check
      _
    $region23: #{tpu_custom_call.1} parent=1 // pred_check_branch
      %57 = sbr.rel (0) target = $region25
    $region24: #{tpu_custom_call.1} parent=1 // pred_region
      _
    $region25: #{tpu_custom_call.1} parent=1 // pred_fallthru
      _
    // Predicated region
    $region26: #{tpu_custom_call.1} parent=1 // pred_check
      _
    $region27: #{tpu_custom_call.1} parent=1 // pred_check_branch
      %59 = sbr.rel (0) target = $region29
    $region28: #{tpu_custom_call.1} parent=1 // pred_region
      %61 = dma.done [#allocation4], 128
    $region29: #{tpu_custom_call.1} parent=1 // pred_fallthru
      _
    // Predicated region
    $region30: #{tpu_custom_call.1} parent=1 // pred_check
      _
    $region31: #{tpu_custom_call.1} parent=1 // pred_check_branch
      %63 = sbr.rel (0) target = $region33
    $region32: #{tpu_custom_call.1} parent=1 // pred_region
      %65 = dma.done [#allocation7], 2048
    $region33: #{tpu_custom_call.1} parent=1 // pred_fallthru
      _
    // Predicated region
    $region34: #{tpu_custom_call.1} parent=1 // pred_check
      _
    $region35: #{tpu_custom_call.1} parent=1 // pred_check_branch
      %67 = sbr.rel (0) target = $region37
    $region36: #{tpu_custom_call.1} parent=1 // pred_region
      %69 = dma.done [#allocation7], 2048
    $region37: #{tpu_custom_call.1} parent=1 // pred_fallthru
      _
    %v70 = vld [vmem:[#allocation3] sm:$0xff]
    %v71 = vld [vmem:[#allocation6] sm:$0xff]
    %v72 = vld [vmem:[#allocation6 + $0x8] sm:$0xff]
    %v73 = vld [vmem:[#allocation6 + $0x10] sm:$0xff]
    %v74 = vld [vmem:[#allocation6 + $0x18] sm:$0xff]
    %v75 = vld [vmem:[#allocation6 + $0x20] sm:$0xff]
    %v76 = vld [vmem:[#allocation6 + $0x28] sm:$0xff]
    %v77 = vld [vmem:[#allocation6 + $0x30] sm:$0xff]
    %v78 = vld [vmem:[#allocation6 + $0x38] sm:$0xff]
    %v79 = vld [vmem:[#allocation6 + $0x40] sm:$0xff]
    %v80 = vld [vmem:[#allocation6 + $0x48] sm:$0xff]
    %v81 = vld [vmem:[#allocation6 + $0x50] sm:$0xff]
    %v82 = vld [vmem:[#allocation6 + $0x58] sm:$0xff]
    %v83 = vld [vmem:[#allocation6 + $0x60] sm:$0xff]
    %v84 = vld [vmem:[#allocation6 + $0x68] sm:$0xff]
    %v85 = vld [vmem:[#allocation6 + $0x70] sm:$0xff]
    %v86 = vld [vmem:[#allocation6 + $0x78] sm:$0xff]
    %v87 = vld [vmem:[%s3] sm:$0x1]
    %v89 = vperm.slane %v87, 0
    %91 = vmatpush.msra.mxu0 %v86
    %92 = vmatpush.msra.mxu0 %v85
    %93 = vmatpush.msra.mxu0 %v84
    %94 = vmatpush.msra.mxu0 %v83
    %95 = vmatpush.msra.mxu0 %v82
    %96 = vmatpush.msra.mxu0 %v81
    %97 = vmatpush.msra.mxu0 %v80
    %98 = vmatpush.msra.mxu0 %v79
    %99 = vmatpush.msra.mxu0 %v78
    %100 = vmatpush.msra.mxu0 %v77
    %101 = vmatpush.msra.mxu0 %v76
    %102 = vmatpush.msra.mxu0 %v75
    %103 = vmatpush.msra.mxu0 %v74
    %104 = vmatpush.msra.mxu0 %v73
    %105 = vmatpush.msra.mxu0 %v72
    %106 = vmatpush.msra.mxu0 %v71
    %107 = vmatmul.f32.gmra.mxu0 %v70
    %v108 = vpop.f32.mrf.mxu0
    %v109 = vadd.f32 %v89, %v108
    %110 = vdwg.mxu0
    %v111 = vmax.f32 %v109, 0.0
    %v112 = vld [vmem:[#allocation8] sm:$0xff]
    %v113 = vld [vmem:[#allocation8 + $0x8] sm:$0xff]
    %v114 = vld [vmem:[#allocation8 + $0x10] sm:$0xff]
    %v115 = vld [vmem:[#allocation8 + $0x18] sm:$0xff]
    %v116 = vld [vmem:[#allocation8 + $0x20] sm:$0xff]
    %v117 = vld [vmem:[#allocation8 + $0x28] sm:$0xff]
    %v118 = vld [vmem:[#allocation8 + $0x30] sm:$0xff]
    %v119 = vld [vmem:[#allocation8 + $0x38] sm:$0xff]
    %v120 = vld [vmem:[#allocation8 + $0x40] sm:$0xff]
    %v121 = vld [vmem:[#allocation8 + $0x48] sm:$0xff]
    %v122 = vld [vmem:[#allocation8 + $0x50] sm:$0xff]
    %v123 = vld [vmem:[#allocation8 + $0x58] sm:$0xff]
    %v124 = vld [vmem:[#allocation8 + $0x60] sm:$0xff]
    %v125 = vld [vmem:[#allocation8 + $0x68] sm:$0xff]
    %v126 = vld [vmem:[#allocation8 + $0x70] sm:$0xff]
    %v127 = vld [vmem:[#allocation8 + $0x78] sm:$0xff]
    %v128 = vld [vmem:[%s5] sm:$0x1]
    %v130 = vperm.slane %v128, 0
    %132 = vmatpush.msra.mxu0 %v127
    %133 = vmatpush.msra.mxu0 %v126
    %134 = vmatpush.msra.mxu0 %v125
    %135 = vmatpush.msra.mxu0 %v124
    %136 = vmatpush.msra.mxu0 %v123
    %137 = vmatpush.msra.mxu0 %v122
    %138 = vmatpush.msra.mxu0 %v121
    %139 = vmatpush.msra.mxu0 %v120
    %140 = vmatpush.msra.mxu0 %v119
    %141 = vmatpush.msra.mxu0 %v118
    %142 = vmatpush.msra.mxu0 %v117
    %143 = vmatpush.msra.mxu0 %v116
    %144 = vmatpush.msra.mxu0 %v115
    %145 = vmatpush.msra.mxu0 %v114
    %146 = vmatpush.msra.mxu0 %v113
    %147 = vmatpush.msra.mxu0 %v112
    %148 = vmatmul.f32.gmra.mxu0 %v111
    %v149 = vpop.f32.mrf.mxu0
    %v150 = vadd.f32 %v130, %v149
    %151 = vdwg.mxu0
    %152 = vst [vmem:[#allocation9] sm:$0xff] %v150
    // Predicated region
    $region38: #{tpu_custom_call.1} parent=1 // pred_check
      _
    $region39: #{tpu_custom_call.1} parent=1 // pred_check_branch
      %154 = sbr.rel (0) target = $region41
    $region40: #{tpu_custom_call.1} parent=1 // pred_region
      %156 = vsyncadd [#allocation5], 0
      %s158 = sshll.u32 [#allocation9], 4
      %s159 = int_to_ptr.vmem [resolvable:$true] %s158
      %s160 = sshll.u32 %s6, 4
      %s161 = int_to_ptr.hbm [resolvable:$true] %s160
      %163 = dma.vmem_to_hbm [thread:$0]  %s159, 128, %s161, [#allocation5]
    $region41: #{tpu_custom_call.1} parent=1 // pred_fallthru
      _
    // Predicated region
    $region42: #{tpu_custom_call.1} parent=1 // pred_check
      _
    $region43: #{tpu_custom_call.1} parent=1 // pred_check_branch
      %165 = sbr.rel (0) target = $region45
    $region44: #{tpu_custom_call.1} parent=1 // pred_region
      %167 = dma.done [#allocation5], 128
    $region45: #{tpu_custom_call.1} parent=1 // pred_fallthru
      _
    %168 = vsyncpa [#allocation4], 1
    %169 = vsyncpa [#allocation7], 1
    %170 = vsyncpa [#allocation5], 1

</llo_original>
